<compile_context>
chip_gen: v7x
topology: tpu7x:2x2x1
jax: 0.10.0
libtpu: 0.0.40
codegen_flags: <defaults>
</compile_context>

<pallas_src>
import functools

import jax
import jax.numpy as jnp
from jax.experimental import pallas as pl
from jax.experimental.pallas import tpu as pltpu

EPS = 1e-5
LANES = 128


def _rmsnorm_packed_kernel(x_ref, g_ref, m_ref, o_ref, *, inv_d, mxu_dtype):
    # x_ref: (tm, W) lane-dense; each row holds W // D consecutive tokens.
    # g_ref: (1, W)  f32 RMSNorm weight tiled `pack` times.
    # m_ref: (W, W)  block-diagonal ones (M[i, j] = i//D == j//D), mxu_dtype.
    # o_ref: (tm, W)
    x = x_ref[...].astype(jnp.float32)
    xx = x * x
    # Segmented per-token sum of squares on the otherwise-idle MXU; the result
    # is already broadcast over each token's own D lanes, so every vreg and
    # every vector store stays fully lane-dense (no cross-lane surgery).
    ss = jnp.dot(xx.astype(mxu_dtype), m_ref[...],
                 preferred_element_type=jnp.float32)
    inv = jax.lax.rsqrt(ss * inv_d + EPS)
    o_ref[...] = (x * inv * g_ref[...]).astype(o_ref.dtype)


def _rmsnorm_plain_kernel(x_ref, g_ref, o_ref):
    # x_ref: (tm, D)   g_ref: (1, D) f32   o_ref: (tm, D)
    x = x_ref[...].astype(jnp.float32)
    ms = jnp.mean(x * x, axis=-1, keepdims=True)
    o_ref[...] = (x * jax.lax.rsqrt(ms + EPS) * g_ref[...]).astype(o_ref.dtype)


def _pick_tile_rows(rows, row_bytes_in, row_bytes_out, sublane):
    """Rows per grid step: ~4 MiB streamed in per step, VMEM-capped, >=4 steps."""
    target_in_bytes = 4 << 20           # amortizes ~0.35 us per-step overhead
    vmem_tile_budget = 32 << 20         # 2x double-buffered in + out tiles
    tm = min(target_in_bytes // max(row_bytes_in, 1),
             vmem_tile_budget // (2 * (row_bytes_in + row_bytes_out)))
    # Keep at least ~4 grid steps so input DMA / compute / output DMA overlap.
    tm = min(tm, -(-rows // 4))
    tm = max(sublane, (int(tm) // sublane) * sublane)
    if tm >= rows:
        return rows                     # single full block (legal: == array dim)
    return tm


def rms_norm(x, weight):
    """RMSNorm over the last dim of `x` (any leading shape), eps=1e-5."""
    orig_shape = x.shape
    D = int(orig_shape[-1])
    N = 1
    for s in orig_shape[:-1]:
        N *= int(s)
    if N == 0:
        return x

    out_dtype = x.dtype
    itemsize = jnp.dtype(x.dtype).itemsize
    out_itemsize = jnp.dtype(out_dtype).itemsize
    # dtype-correct sublane multiple: 8 for f32, 16 for bf16, 32 for 1-byte.
    sublane = max(8, 32 // max(itemsize, 1))

    g = weight.astype(jnp.float32)

    # Lane-dense packing: `pack` consecutive tokens per 128-lane row when D
    # divides 128 (free, contiguous reshape; no HBM transpose).
    pack = LANES // D if (D < LANES and LANES % D == 0) else 1
    W = pack * D

    x2 = x.reshape(N, D)
    pad_tokens = (-N) % pack
    if pad_tokens:
        # Tiny pad (< pack tokens) so the zero-copy row-major reshape to
        # (rows, W) exists; zero tokens normalize harmlessly to 0.
        x2 = jnp.pad(x2, ((0, pad_tokens), (0, 0)))
    n_tok = N + pad_tokens
    rows = n_tok // pack
    xr = x2.reshape(rows, W)

    tm = _pick_tile_rows(rows, W * itemsize, W * out_itemsize, sublane)
    grid = (pl.cdiv(rows, tm),)         # ragged last block is edge-clipped

    x_spec = pl.BlockSpec((tm, W), lambda i: (i, 0))
    g_spec = pl.BlockSpec((1, W), lambda i: (0, 0))
    out_spec = pl.BlockSpec((tm, W), lambda i: (i, 0))
    g_row = jnp.tile(g, pack).reshape(1, W)

    if pack > 1:
        # bf16 MXU operands for <=16-bit I/O (full-rate MXU keeps the kernel
        # HBM-bound on v5e/v7x); exact f32 matmul for f32 I/O (memory-bound).
        mxu_dtype = jnp.bfloat16 if itemsize <= 2 else jnp.float32
        lane_i = jax.lax.broadcasted_iota(jnp.int32, (W, W), 0) // D
        lane_j = jax.lax.broadcasted_iota(jnp.int32, (W, W), 1) // D
        mask = (lane_i == lane_j).astype(mxu_dtype)      # block-diagonal ones
        kernel = functools.partial(_rmsnorm_packed_kernel, inv_d=1.0 / D,
                                   mxu_dtype=mxu_dtype)
        in_specs = [x_spec, g_spec, pl.BlockSpec((W, W), lambda i: (0, 0))]
        args = (xr, g_row, mask)
    else:
        kernel = _rmsnorm_plain_kernel
        in_specs = [x_spec, g_spec]
        args = (xr, g_row)

    out = pl.pallas_call(
        kernel,
        out_shape=jax.ShapeDtypeStruct((rows, W), out_dtype),
        grid=grid,
        in_specs=in_specs,
        out_specs=out_spec,
        compiler_params=pltpu.CompilerParams(
            dimension_semantics=("parallel",),
            vmem_limit_bytes=48 * 1024 * 1024),
    )(*args)

    out = out.reshape(n_tok, D)
    if pad_tokens:
        out = out[:N]
    return out.reshape(orig_shape)


def rms_norm_ref(x, weight):
    """Pure-JAX reference matching F.rms_norm(x, (D,), weight, eps=1e-5)."""
    xf = x.astype(jnp.float32)
    ms = jnp.mean(xf * xf, axis=-1, keepdims=True)
    y = xf * jax.lax.rsqrt(ms + EPS) * weight.astype(jnp.float32)
    return y.astype(x.dtype)


if __name__ == "__main__":
    key = jax.random.PRNGKey(0)

    cases = [
        ((2, 8, 32), jnp.float32),    # AO-GPT-like: n_embd=32, packed path
        ((3, 5, 32), jnp.float32),    # token count not a multiple of pack
        ((2, 8, 32), jnp.bfloat16),   # packed path with bf16 I/O + bf16 MXU
        ((2, 8, 128), jnp.bfloat16),  # lane-full D, plain path, bf16 I/O
    ]

    for i, (shape, dtype) in enumerate(cases):
        kx, kw, key = jax.random.split(key, 3)
        x = jax.random.normal(kx, shape, dtype=jnp.float32).astype(dtype)
        w = 1.0 + 0.1 * jax.random.normal(kw, (shape[-1],), dtype=jnp.float32)

        out = jax.block_until_ready(rms_norm(x, w))
        ref = rms_norm_ref(x, w)

        assert out.shape == shape and out.dtype == dtype
        tol = 1e-4 if dtype == jnp.float32 else 2e-2
        assert jnp.allclose(out.astype(jnp.float32), ref.astype(jnp.float32),
                            atol=tol, rtol=tol), f"mismatch vs reference in case {i}"

    print("KERNEL_OK")
</pallas_src>

<mosaic_0001>
module attributes {stable_mosaic.version = 11 : i64} {
  func.func @_rmsnorm_packed_kernel(%arg0: i32, %arg1: memref<4x128xf32, #tpu.memory_space<vmem>>, %arg2: memref<1x128xf32, #tpu.memory_space<vmem>>, %arg3: memref<128x128xf32, #tpu.memory_space<vmem>>, %arg4: memref<4x128xf32, #tpu.memory_space<vmem>>) attributes {dimension_semantics = [#tpu.dimension_semantics<parallel>], iteration_bounds = array<i64: 1>, scalar_prefetch = 0 : i64, scratch_operands = 0 : i64, tpu.core_type = #tpu.core_type<tc>, window_params = [{transform_indices = @transform_0, window_bounds = array<i64: 4, 128>}, {pipeline_mode = #tpu.pipeline_mode<synchronous>, transform_indices = @transform_1, window_bounds = array<i64: 1, 128>}, {pipeline_mode = #tpu.pipeline_mode<synchronous>, transform_indices = @transform_2, window_bounds = array<i64: 128, 128>}, {transform_indices = @transform_3, window_bounds = array<i64: 4, 128>}]} {
    %c0 = arith.constant 0 : index
    %c0_0 = arith.constant 0 : index
    %0 = vector.load %arg1[%c0, %c0_0] : memref<4x128xf32, #tpu.memory_space<vmem>>, vector<4x128xf32>
    %1 = arith.mulf %0, %0 : vector<4x128xf32>
    %c0_1 = arith.constant 0 : index
    %c0_2 = arith.constant 0 : index
    %2 = vector.load %arg3[%c0_1, %c0_2] : memref<128x128xf32, #tpu.memory_space<vmem>>, vector<128x128xf32>
    %cst = arith.constant dense<0.000000e+00> : vector<4x128xf32>
    %3 = tpu.matmul %1, %2, %cst {dimension_numbers = #tpu.dot_dimension_numbers<[1], [0], [0], [1], [0, 0, 1, 1], [], []>} : vector<4x128xf32>, vector<128x128xf32>, vector<4x128xf32> -> vector<4x128xf32>
    %cst_3 = arith.constant 3.125000e-02 : f32
    %4 = vector.broadcast %cst_3 : f32 to vector<4x128xf32>
    %5 = arith.mulf %3, %4 : vector<4x128xf32>
    %cst_4 = arith.constant 9.99999974E-6 : f32
    %6 = vector.broadcast %cst_4 : f32 to vector<4x128xf32>
    %7 = arith.addf %5, %6 : vector<4x128xf32>
    %8 = math.rsqrt %7 : vector<4x128xf32>
    %9 = arith.mulf %0, %8 : vector<4x128xf32>
    %c0_5 = arith.constant 0 : index
    %c0_6 = arith.constant 0 : index
    %10 = vector.load %arg2[%c0_5, %c0_6] : memref<1x128xf32, #tpu.memory_space<vmem>>, vector<1x128xf32>
    %11 = vector.broadcast %10 : vector<1x128xf32> to vector<4x128xf32>
    %12 = arith.mulf %9, %11 : vector<4x128xf32>
    %c0_7 = arith.constant 0 : index
    %c0_8 = arith.constant 0 : index
    %13 = vector.load %arg4[%c0_7, %c0_8] : memref<4x128xf32, #tpu.memory_space<vmem>>, vector<4x128xf32>
    tpu.vector_store %arg4[%c0_7, %c0_8], %12 {strides = array<i32>} : memref<4x128xf32, #tpu.memory_space<vmem>>, vector<4x128xf32>,
    return
  }
  func.func @transform_0(%arg0: i32) -> (i32, i32) {
    %c0_i32 = arith.constant 0 : i32
    %c0_i32_0 = arith.constant 0 : i32
    return %arg0, %c0_i32 : i32, i32
  }
  func.func @transform_1(%arg0: i32) -> (i32, i32) {
    %c0_i32 = arith.constant 0 : i32
    %c0_i32_0 = arith.constant 0 : i32
    %c0_i32_1 = arith.constant 0 : i32
    return %c0_i32, %c0_i32_0 : i32, i32
  }
  func.func @transform_2(%arg0: i32) -> (i32, i32) {
    %c0_i32 = arith.constant 0 : i32
    %c0_i32_0 = arith.constant 0 : i32
    %c0_i32_1 = arith.constant 0 : i32
    return %c0_i32, %c0_i32_0 : i32, i32
  }
  func.func @transform_3(%arg0: i32) -> (i32, i32) {
    %c0_i32 = arith.constant 0 : i32
    %c0_i32_0 = arith.constant 0 : i32
    return %arg0, %c0_i32 : i32, i32
  }
}

</mosaic_0001>

<llo_original>
// kernel: tpu_custom_call.1
$region0: #{tpu_custom_call.1}
  #allocation0 [shape = 'u32[]', space=smem, size = 0x4, offset = 0x4, fixed_abs, tag = 'smem constant byte address 0x4 - core index']
  #allocation1 [shape = 'u32[144,128]{1,0:T(1,128)}', space=vmem, size = 0x12000, scoped, tag = 'internal scratch']
  %s0 = inlined_call_operand.hbm [shape: f32[4,128], index: 0, kind: input, shape index: {}]
  %s1 = inlined_call_operand.vmem [shape: f32[1,128], index: 1, kind: input, shape index: {}]
  %s2 = inlined_call_operand.hbm [shape: f32[128,128], index: 2, kind: input, shape index: {}]
  %s3 = inlined_call_operand.hbm [shape: f32[4,128], index: 3, kind: output, shape index: {}]
  %s4 = sld [smem:[#allocation0]]
  $region30: #{tpu_custom_call.1} parent=0
    _
  %s6 = ssub.s32 1, %s4
  %s7 = scalar_select 0, %s6, %s4
  $region1: #{tpu_custom_call.1} parent=0
    #allocation2 [shape = 'u8[2048]{0}', space=vmem, size = 0x800, scoped, tag = 'input window, operand 0, single buffered']
    #allocation3 [shape = 's32[1]{0}', space=sflag, size = 0x4, scoped, tag = 'scoped memory for tpu_custom_call.1']
    #allocation4 [shape = 's32[1]{0}', space=sflag, size = 0x4, scoped, tag = 'scoped memory for tpu_custom_call.1']
    #allocation5 [shape = 'u8[65536]{0}', space=vmem, size = 0x10000, scoped, tag = 'input window, operand 2, single buffered']
    #allocation6 [shape = 's32[1]{0}', space=sflag, size = 0x4, scoped, tag = 'scoped memory for tpu_custom_call.1']
    #allocation7 [shape = 'u8[2048]{0}', space=vmem, size = 0x800, scoped, tag = 'output window, operand 0, single buffered']
    %8 = vsyncpa [#allocation3], 0
    %9 = vsyncpa [#allocation6], 0
    %10 = vsyncpa [#allocation4], 0
    // Predicated region
    $region2: #{tpu_custom_call.1} parent=1 // pred_check
      _
    $region3: #{tpu_custom_call.1} parent=1 // pred_check_branch
      %12 = sbr.rel (0) target = $region5
    $region4: #{tpu_custom_call.1} parent=1 // pred_region
      %s14 = ssub.s32 64, 64
      %15 = vsyncadd [#allocation3], %s14
      %s17 = sshll.u32 [#allocation2], 4
      %s18 = int_to_ptr.vmem [resolvable:$true] %s17
      %20 = dma.hbm_to_vmem [thread:$0]  %s0, 64, %s18, [#allocation3]
    $region5: #{tpu_custom_call.1} parent=1 // pred_fallthru
      _
    // Predicated region
    $region6: #{tpu_custom_call.1} parent=1 // pred_check
      _
    $region7: #{tpu_custom_call.1} parent=1 // pred_check_branch
      %22 = sbr.rel (0) target = $region9
    $region8: #{tpu_custom_call.1} parent=1 // pred_region
      _
    $region9: #{tpu_custom_call.1} parent=1 // pred_fallthru
      _
    // Predicated region
    $region10: #{tpu_custom_call.1} parent=1 // pred_check
      _
    $region11: #{tpu_custom_call.1} parent=1 // pred_check_branch
      %24 = sbr.rel (0) target = $region13
    $region12: #{tpu_custom_call.1} parent=1 // pred_region
      %s26 = ssub.s32 2048, 2048
      %27 = vsyncadd [#allocation6], %s26
      %s28 = sshll.u32 [#allocation5], 4
      %s29 = int_to_ptr.vmem [resolvable:$true] %s28
      %34 = dma.hbm_to_vmem [thread:$0]  %s2, 2048, %s29, [#allocation6], 128, 128, 8
    $region13: #{tpu_custom_call.1} parent=1 // pred_fallthru
      _
    // Predicated region
    $region14: #{tpu_custom_call.1} parent=1 // pred_check
      _
    $region15: #{tpu_custom_call.1} parent=1 // pred_check_branch
      %36 = sbr.rel (0) target = $region17
    $region16: #{tpu_custom_call.1} parent=1 // pred_region
      %37 = dma.done [#allocation3], 64
    $region17: #{tpu_custom_call.1} parent=1 // pred_fallthru
      _
    // Predicated region
    $region18: #{tpu_custom_call.1} parent=1 // pred_check
      _
    $region19: #{tpu_custom_call.1} parent=1 // pred_check_branch
      %39 = sbr.rel (0) target = $region21
    $region20: #{tpu_custom_call.1} parent=1 // pred_region
      %40 = dma.done [#allocation6], 2048
    $region21: #{tpu_custom_call.1} parent=1 // pred_fallthru
      _
    %v41 = vld [vmem:[#allocation2] sm:$0xf]
    %v42 = vmul.f32 %v41, %v41
    %v43 = vld [vmem:[#allocation5] sm:$0xff]
    %v44 = vld [vmem:[#allocation5 + $0x8] sm:$0xff]
    %v45 = vld [vmem:[#allocation5 + $0x10] sm:$0xff]
    %v46 = vld [vmem:[#allocation5 + $0x18] sm:$0xff]
    %v47 = vld [vmem:[#allocation5 + $0x20] sm:$0xff]
    %v48 = vld [vmem:[#allocation5 + $0x28] sm:$0xff]
    %v49 = vld [vmem:[#allocation5 + $0x30] sm:$0xff]
    %v50 = vld [vmem:[#allocation5 + $0x38] sm:$0xff]
    %v51 = vld [vmem:[#allocation5 + $0x40] sm:$0xff]
    %v52 = vld [vmem:[#allocation5 + $0x48] sm:$0xff]
    %v53 = vld [vmem:[#allocation5 + $0x50] sm:$0xff]
    %v54 = vld [vmem:[#allocation5 + $0x58] sm:$0xff]
    %v55 = vld [vmem:[#allocation5 + $0x60] sm:$0xff]
    %v56 = vld [vmem:[#allocation5 + $0x68] sm:$0xff]
    %v57 = vld [vmem:[#allocation5 + $0x70] sm:$0xff]
    %v58 = vld [vmem:[#allocation5 + $0x78] sm:$0xff]
    %59 = vmatprep.subr.mxu0 0.0
    %60 = vmatpush1.msra.mxu0 %v43
    %61 = vmatprep.subr.mxu0 0.0
    %62 = vmatpush1.msra.mxu0 %v44
    %63 = vmatprep.subr.mxu0 0.0
    %64 = vmatpush1.msra.mxu0 %v45
    %65 = vmatprep.subr.mxu0 0.0
    %66 = vmatpush1.msra.mxu0 %v46
    %67 = vmatprep.subr.mxu0 0.0
    %68 = vmatpush1.msra.mxu0 %v47
    %69 = vmatprep.subr.mxu0 0.0
    %70 = vmatpush1.msra.mxu0 %v48
    %71 = vmatprep.subr.mxu0 0.0
    %72 = vmatpush1.msra.mxu0 %v49
    %73 = vmatprep.subr.mxu0 0.0
    %74 = vmatpush1.msra.mxu0 %v50
    %75 = vmatprep.subr.mxu0 0.0
    %76 = vmatpush1.msra.mxu0 %v51
    %77 = vmatprep.subr.mxu0 0.0
    %78 = vmatpush1.msra.mxu0 %v52
    %79 = vmatprep.subr.mxu0 0.0
    %80 = vmatpush1.msra.mxu0 %v53
    %81 = vmatprep.subr.mxu0 0.0
    %82 = vmatpush1.msra.mxu0 %v54
    %83 = vmatprep.subr.mxu0 0.0
    %84 = vmatpush1.msra.mxu0 %v55
    %85 = vmatprep.subr.mxu0 0.0
    %86 = vmatpush1.msra.mxu0 %v56
    %87 = vmatprep.subr.mxu0 0.0
    %88 = vmatpush1.msra.mxu0 %v57
    %89 = vmatprep.subr.mxu0 0.0
    %90 = vmatpush1.msra.mxu0 %v58
    %91 = vmatprep.subr.mxu0 0.0
    %92 = vmatpush1.msra.mxu0 0.0
    %93 = vmatprep.subr.mxu0 0.0
    %94 = vmatpush1.msra.mxu0 0.0
    %95 = vmatprep.subr.mxu0 0.0
    %96 = vmatpush1.msra.mxu0 0.0
    %97 = vmatprep.subr.mxu0 0.0
    %98 = vmatpush1.msra.mxu0 0.0
    %99 = vmatprep.subr.mxu0 0.0
    %100 = vmatpush1.msra.mxu0 0.0
    %101 = vmatprep.subr.mxu0 0.0
    %102 = vmatpush1.msra.mxu0 0.0
    %103 = vmatprep.subr.mxu0 0.0
    %104 = vmatpush1.msra.mxu0 0.0
    %105 = vmatprep.subr.mxu0 0.0
    %106 = vmatpush1.msra.mxu0 0.0
    %107 = vmatprep.subr.mxu0 0.0
    %108 = vmatpush1.msra.mxu0 0.0
    %109 = vmatprep.subr.mxu0 0.0
    %110 = vmatpush1.msra.mxu0 0.0
    %111 = vmatprep.subr.mxu0 0.0
    %112 = vmatpush1.msra.mxu0 0.0
    %113 = vmatprep.subr.mxu0 0.0
    %114 = vmatpush1.msra.mxu0 0.0
    %115 = vmatprep.subr.mxu0 0.0
    %116 = vmatpush1.msra.mxu0 0.0
    %117 = vmatprep.subr.mxu0 0.0
    %118 = vmatpush1.msra.mxu0 0.0
    %119 = vmatprep.subr.mxu0 0.0
    %120 = vmatpush1.msra.mxu0 0.0
    %121 = vmatprep.subr.mxu0 0.0
    %122 = vmatpush1.msra.mxu0 0.0
    %123 = vmatprep.mubr.f32.mxu0 0.0
    %124 = vmatmul.mubr.f32.gmra.mrb[0].mxu0 %v42
    %v125 = vpop.f32.mrb[0].mxu0
    %v126 = vadd.f32 0.0, %v125
    %v127 = vpop.f32.mrb[0].mxu0
    %128 = vdwg.mxu0
    %v129 = vmul.f32 %v126, 0.03125
    %v130 = vadd.f32 %v129, 1e-05
    %v131 = vrsqrt.pop %v130
    %v132 = vmul.f32 %v41, %v131
    %v133 = vld [vmem:[%s1] sm:$0x1]
    %v135 = vlaneseq
    %v136 = vshrl.u32 %v135, 7
    %v137 = vsub.s32 0, %v136
    %v138 = vrot.slane %v133, %v137
    %v140 = vmul.f32 %v132, %v138
    %141 = vst [vmem:[#allocation7] sm:$0xf] %v140
    // Predicated region
    $region22: #{tpu_custom_call.1} parent=1 // pred_check
      _
    $region23: #{tpu_custom_call.1} parent=1 // pred_check_branch
      %143 = sbr.rel (0) target = $region25
    $region24: #{tpu_custom_call.1} parent=1 // pred_region
      %s145 = ssub.s32 64, 64
      %146 = vsyncadd [#allocation4], %s145
      %s148 = sshll.u32 [#allocation7], 4
      %s149 = int_to_ptr.vmem [resolvable:$true] %s148
      %151 = dma.vmem_to_hbm [thread:$0]  %s149, 64, %s3, [#allocation4]
    $region25: #{tpu_custom_call.1} parent=1 // pred_fallthru
      _
    // Predicated region
    $region26: #{tpu_custom_call.1} parent=1 // pred_check
      _
    $region27: #{tpu_custom_call.1} parent=1 // pred_check_branch
      %153 = sbr.rel (0) target = $region29
    $region28: #{tpu_custom_call.1} parent=1 // pred_region
      %154 = dma.done [#allocation4], 64
    $region29: #{tpu_custom_call.1} parent=1 // pred_fallthru
      _
    %155 = vsyncpa [#allocation3], 1
    %156 = vsyncpa [#allocation6], 1
    %157 = vsyncpa [#allocation4], 1

</llo_original>
